<compile_context>
chip_gen: v5e
topology: v5e:2x2
jax: 0.10.0
libtpu: 0.0.40
codegen_flags: <defaults>
</compile_context>

<pallas_src>
import jax
import jax.numpy as jnp
from jax.experimental import pallas as pl
from jax.experimental.pallas import tpu as pltpu


# ----------------------------------------------------------------------------
# Pallas kernels
# ----------------------------------------------------------------------------
def _conv_gemm_kernel(w_ref, p_ref, b_ref, o_ref):
    # w_ref: (Cout, K)      BN-folded conv weight (resident)
    # p_ref: (K, TILE)      im2col patch tile (lane-dense, streamed)
    # b_ref: (Cout, 1)      BN-folded bias (resident, f32)
    # o_ref: (Cout, TILE)   lane-dense output tile (f32)
    acc = jnp.dot(w_ref[...], p_ref[...], preferred_element_type=jnp.float32)
    o_ref[...] = (acc + b_ref[...]).astype(o_ref.dtype)


def _maxpool9_kernel(t_ref, o_ref):
    # t_ref: (9, C, TILE)   the 9 pooling taps (lane-dense)
    # o_ref: (C, TILE)
    acc = t_ref[0]
    for tap in range(1, t_ref.shape[0]):      # static 9-way elementwise max (VPU)
        acc = jnp.maximum(acc, t_ref[tap])
    o_ref[...] = acc.astype(o_ref.dtype)


# ----------------------------------------------------------------------------
# Glue helpers
# ----------------------------------------------------------------------------
def _round_up(n, m):
    return ((n + m - 1) // m) * m


def _im2col_T(x_nhwc, ksize, stride, padding, pad_value=0.0):
    """Transposed im2col: returns patches of shape (k*k*Cin, N*Ho*Wo)."""
    N, H, W, C = x_nhwc.shape
    Ho = (H + 2 * padding - ksize) // stride + 1
    Wo = (W + 2 * padding - ksize) // stride + 1
    xp = jnp.pad(x_nhwc, ((0, 0), (padding, padding), (padding, padding), (0, 0)),
                 constant_values=pad_value)
    taps = []
    for dh in range(ksize):
        for dw in range(ksize):
            taps.append(xp[:, dh:dh + stride * (Ho - 1) + 1:stride,
                           dw:dw + stride * (Wo - 1) + 1:stride, :])   # (N,Ho,Wo,C)
    t = jnp.stack(taps, axis=0)                      # (k*k, N, Ho, Wo, C)
    t = jnp.transpose(t, (0, 4, 1, 2, 3))            # (k*k, C, N, Ho, Wo)
    return t.reshape(ksize * ksize * C, N * Ho * Wo), (N, Ho, Wo)


def _pick_tile(M, tile_n):
    """Lane-dense tile along M: multiple of 128, <= tile_n, padded M."""
    tile = min(tile_n, _round_up(M, 128))
    m_pad = _round_up(M, tile)
    return tile, m_pad


# ----------------------------------------------------------------------------
# Fused Conv2d(no bias) + BatchNorm (inference)  ==  single GEMM + bias
# ----------------------------------------------------------------------------
def conv_bn_fused(x_nhwc, w, gamma, beta, mean, var, eps, *, stride, padding,
                  compute_dtype=jnp.float32, tile_n=1024):
    Cout, Cin, kh, kw = w.shape
    assert kh == kw

    # Fold BN into the conv (no nonlinearity in between).
    inv_std = jax.lax.rsqrt(var + eps)
    scale = gamma * inv_std                                        # (Cout,)
    w_fold = w * scale[:, None, None, None]                        # (Cout,Cin,kh,kw)
    b_fold = (beta - mean * scale).reshape(Cout, 1).astype(jnp.float32)
    # (Cout,Cin,kh,kw) -> (Cout, kh, kw, Cin) -> (Cout, K): matches patch order.
    w_mat = jnp.transpose(w_fold, (0, 2, 3, 1)).reshape(Cout, kh * kw * Cin)

    patches, (N, Ho, Wo) = _im2col_T(x_nhwc, kh, stride, padding)
    K, M = patches.shape
    tile, m_pad = _pick_tile(M, tile_n)
    patches = jnp.pad(patches, ((0, 0), (0, m_pad - M)))
    grid = (m_pad // tile,)

    isz = jnp.dtype(compute_dtype).itemsize
    out = pl.pallas_call(
        _conv_gemm_kernel,
        out_shape=jax.ShapeDtypeStruct((Cout, m_pad), jnp.float32),
        grid=grid,
        in_specs=[
            pl.BlockSpec((Cout, K), lambda i: (0, 0)),        # weight (resident)
            pl.BlockSpec((K, tile), lambda i: (0, i)),        # patches (streamed)
            pl.BlockSpec((Cout, 1), lambda i: (0, 0)),        # bias (resident)
        ],
        out_specs=pl.BlockSpec((Cout, tile), lambda i: (0, i)),
        compiler_params=pltpu.CompilerParams(dimension_semantics=("parallel",)),
        cost_estimate=pl.CostEstimate(
            flops=2 * Cout * K * m_pad,
            transcendentals=0,
            bytes_accessed=K * m_pad * isz + Cout * K * isz
            + Cout * m_pad * 4 + Cout * 4),
    )(w_mat.astype(compute_dtype), patches.astype(compute_dtype), b_fold)

    out = out[:, :M].reshape(Cout, N, Ho, Wo)
    return jnp.transpose(out, (1, 2, 3, 0))                        # NHWC


# ----------------------------------------------------------------------------
# MaxPool2d(kernel=3, stride=2, padding=1, ceil_mode=False)
# ----------------------------------------------------------------------------
def maxpool_3x3_s2(x_nhwc, *, tile_n=1024):
    N, H, W, C = x_nhwc.shape
    Ho = (H + 2 - 3) // 2 + 1
    Wo = (W + 2 - 3) // 2 + 1
    xp = jnp.pad(x_nhwc, ((0, 0), (1, 1), (1, 1), (0, 0)),
                 constant_values=-jnp.inf)                         # torch pads max with -inf
    taps = [xp[:, dh:dh + 2 * (Ho - 1) + 1:2, dw:dw + 2 * (Wo - 1) + 1:2, :]
            for dh in range(3) for dw in range(3)]
    t = jnp.transpose(jnp.stack(taps, axis=0), (0, 4, 1, 2, 3))    # (9, C, N, Ho, Wo)
    M = N * Ho * Wo
    t = t.reshape(9, C, M)
    tile, m_pad = _pick_tile(M, tile_n)
    t = jnp.pad(t, ((0, 0), (0, 0), (0, m_pad - M)), constant_values=-jnp.inf)

    out = pl.pallas_call(
        _maxpool9_kernel,
        out_shape=jax.ShapeDtypeStruct((C, m_pad), jnp.float32),
        grid=(m_pad // tile,),
        in_specs=[pl.BlockSpec((9, C, tile), lambda i: (0, 0, i))],
        out_specs=pl.BlockSpec((C, tile), lambda i: (0, i)),
        compiler_params=pltpu.CompilerParams(dimension_semantics=("parallel",)),
        cost_estimate=pl.CostEstimate(
            flops=9 * C * m_pad, transcendentals=0,
            bytes_accessed=9 * C * m_pad * 4 + C * m_pad * 4),
    )(t.astype(jnp.float32))

    out = out[:, :M].reshape(C, N, Ho, Wo)
    return jnp.transpose(out, (1, 2, 3, 0))                        # NHWC


# ----------------------------------------------------------------------------
# Full StemBlock forward (NCHW in -> NCHW out, matching the PyTorch module)
# ----------------------------------------------------------------------------
def stem_block_forward(x_nchw, params, *, compute_dtype=jnp.float32, tile_n=1024):
    x = jnp.transpose(x_nchw, (0, 2, 3, 1)).astype(jnp.float32)    # NHWC
    cd = dict(compute_dtype=compute_dtype, tile_n=tile_n)

    y = conv_bn_fused(x, **params["conv"], stride=2, padding=1, **cd)     # (N, H/2, W/2, 16)
    l = conv_bn_fused(y, **params["left0"], stride=1, padding=0, **cd)    # (N, H/2, W/2, 8)
    l = conv_bn_fused(l, **params["left1"], stride=2, padding=1, **cd)    # (N, H/4, W/4, 16)
    r = maxpool_3x3_s2(y, tile_n=tile_n)                                  # (N, H/4, W/4, 16)
    f = jnp.concatenate([l, r], axis=-1)                                  # (N, H/4, W/4, 32)
    out = conv_bn_fused(f, **params["fuse"], stride=1, padding=1, **cd)   # (N, H/4, W/4, 16)
    return jnp.transpose(out, (0, 3, 1, 2))                               # NCHW


# ----------------------------------------------------------------------------
# Parameter init (kaiming a=1 for convs, non-trivial BN stats to exercise fold)
# ----------------------------------------------------------------------------
def init_params(key):
    def conv_bn(k, cin, cout, ks):
        k1, k2, k3, k4, k5 = jax.random.split(k, 5)
        fan_in = cin * ks * ks
        w = jax.random.normal(k1, (cout, cin, ks, ks), jnp.float32) * (1.0 / fan_in) ** 0.5
        gamma = 1.0 + 0.1 * jax.random.normal(k2, (cout,), jnp.float32)
        beta = 0.1 * jax.random.normal(k3, (cout,), jnp.float32)
        mean = 0.1 * jax.random.normal(k4, (cout,), jnp.float32)
        var = jnp.abs(jax.random.normal(k5, (cout,), jnp.float32)) + 0.5
        return dict(w=w, gamma=gamma, beta=beta, mean=mean, var=var, eps=1e-5)

    kc, kl0, kl1, kf = jax.random.split(key, 4)
    return dict(conv=conv_bn(kc, 3, 16, 3),
                left0=conv_bn(kl0, 16, 8, 1),
                left1=conv_bn(kl1, 8, 16, 3),
                fuse=conv_bn(kf, 32, 16, 3))


# ----------------------------------------------------------------------------
# Pure-JAX reference (lax conv / reduce_window) for correctness checking
# ----------------------------------------------------------------------------
def _conv_bn_ref(x, w, gamma, beta, mean, var, eps, *, stride, padding):
    y = jax.lax.conv_general_dilated(
        x, w, window_strides=(stride, stride),
        padding=((padding, padding), (padding, padding)),
        dimension_numbers=("NCHW", "OIHW", "NCHW"),
        precision=jax.lax.Precision.HIGHEST)
    inv_std = 1.0 / jnp.sqrt(var + eps)
    return ((y - mean[None, :, None, None]) * inv_std[None, :, None, None]
            * gamma[None, :, None, None] + beta[None, :, None, None])


def _reference(x_nchw, p):
    x = x_nchw.astype(jnp.float32)
    y = _conv_bn_ref(x, **p["conv"], stride=2, padding=1)
    l = _conv_bn_ref(y, **p["left0"], stride=1, padding=0)
    l = _conv_bn_ref(l, **p["left1"], stride=2, padding=1)
    r = jax.lax.reduce_window(y, -jnp.inf, jax.lax.max,
                              window_dimensions=(1, 1, 3, 3),
                              window_strides=(1, 1, 2, 2),
                              padding=((0, 0), (0, 0), (1, 1), (1, 1)))
    f = jnp.concatenate([l, r], axis=1)
    return _conv_bn_ref(f, **p["fuse"], stride=1, padding=1)


if __name__ == "__main__":
    key = jax.random.PRNGKey(0)
    kx, kp = jax.random.split(key)

    N, Cin, H, W = 2, 3, 16, 16          # StemBlock expects 3 input channels
    x = jax.random.normal(kx, (N, Cin, H, W), jnp.float32)
    params = init_params(kp)

    fwd = jax.jit(stem_block_forward, static_argnames=("compute_dtype", "tile_n"))

    # f32 operands: tight numeric parity with the lax.conv reference.
    out = jax.block_until_ready(fwd(x, params, compute_dtype=jnp.float32))
    ref = _reference(x, params)
    assert out.shape == (N, 16, H // 4, W // 4), out.shape
    err = float(jnp.max(jnp.abs(out - ref)))
    assert jnp.allclose(out, ref, atol=1e-3, rtol=1e-3), err

    # bf16 MXU-feed path (production default per perf review): sanity check only.
    out_bf16 = jax.block_until_ready(fwd(x, params, compute_dtype=jnp.bfloat16))
    err_bf16 = float(jnp.max(jnp.abs(out_bf16 - ref)))
    assert err_bf16 < 0.5, err_bf16

    print("KERNEL_OK")
</pallas_src>

<mosaic_0001>
module attributes {stable_mosaic.version = 11 : i64} {
  func.func @_conv_gemm_kernel(%arg0: i32, %arg1: memref<8x16xf32, #tpu.memory_space<vmem>>, %arg2: memref<16x128xf32, #tpu.memory_space<vmem>>, %arg3: memref<8x1xf32, #tpu.memory_space<vmem>>, %arg4: memref<8x128xf32, #tpu.memory_space<vmem>>) attributes {dimension_semantics = [#tpu.dimension_semantics<parallel>], iteration_bounds = array<i64: 1>, scalar_prefetch = 0 : i64, scratch_operands = 0 : i64, tpu.core_type = #tpu.core_type<tc>, window_params = [{pipeline_mode = #tpu.pipeline_mode<synchronous>, transform_indices = @transform_0, window_bounds = array<i64: 8, 16>}, {transform_indices = @transform_1, window_bounds = array<i64: 16, 128>}, {pipeline_mode = #tpu.pipeline_mode<synchronous>, transform_indices = @transform_2, window_bounds = array<i64: 8, 1>}, {transform_indices = @transform_3, window_bounds = array<i64: 8, 128>}]} {
    %c0 = arith.constant 0 : index
    %c0_0 = arith.constant 0 : index
    %0 = vector.load %arg1[%c0, %c0_0] : memref<8x16xf32, #tpu.memory_space<vmem>>, vector<8x16xf32>
    %c0_1 = arith.constant 0 : index
    %c0_2 = arith.constant 0 : index
    %1 = vector.load %arg2[%c0_1, %c0_2] : memref<16x128xf32, #tpu.memory_space<vmem>>, vector<16x128xf32>
    %cst = arith.constant dense<0.000000e+00> : vector<8x128xf32>
    %2 = tpu.matmul %0, %1, %cst {dimension_numbers = #tpu.dot_dimension_numbers<[1], [0], [0], [1], [0, 0, 1, 1], [], []>} : vector<8x16xf32>, vector<16x128xf32>, vector<8x128xf32> -> vector<8x128xf32>
    %c0_3 = arith.constant 0 : index
    %c0_4 = arith.constant 0 : index
    %3 = vector.load %arg3[%c0_3, %c0_4] : memref<8x1xf32, #tpu.memory_space<vmem>>, vector<8x1xf32>
    %4 = vector.broadcast %3 : vector<8x1xf32> to vector<8x128xf32>
    %5 = arith.addf %2, %4 : vector<8x128xf32>
    %c0_5 = arith.constant 0 : index
    %c0_6 = arith.constant 0 : index
    %6 = vector.load %arg4[%c0_5, %c0_6] : memref<8x128xf32, #tpu.memory_space<vmem>>, vector<8x128xf32>
    tpu.vector_store %arg4[%c0_5, %c0_6], %5 {strides = array<i32>} : memref<8x128xf32, #tpu.memory_space<vmem>>, vector<8x128xf32>,
    return
  }
  func.func @transform_0(%arg0: i32) -> (i32, i32) {
    %c0_i32 = arith.constant 0 : i32
    %c0_i32_0 = arith.constant 0 : i32
    %c0_i32_1 = arith.constant 0 : i32
    return %c0_i32, %c0_i32_0 : i32, i32
  }
  func.func @transform_1(%arg0: i32) -> (i32, i32) {
    %c0_i32 = arith.constant 0 : i32
    %c0_i32_0 = arith.constant 0 : i32
    return %c0_i32, %arg0 : i32, i32
  }
  func.func @transform_2(%arg0: i32) -> (i32, i32) {
    %c0_i32 = arith.constant 0 : i32
    %c0_i32_0 = arith.constant 0 : i32
    %c0_i32_1 = arith.constant 0 : i32
    return %c0_i32, %c0_i32_0 : i32, i32
  }
  func.func @transform_3(%arg0: i32) -> (i32, i32) {
    %c0_i32 = arith.constant 0 : i32
    %c0_i32_0 = arith.constant 0 : i32
    return %c0_i32, %arg0 : i32, i32
  }
}

module attributes {stable_mosaic.version = 11 : i64} {
  func.func @_conv_gemm_kernel(%arg0: i32, %arg1: memref<16x27xf32, #tpu.memory_space<vmem>>, %arg2: memref<27x128xf32, #tpu.memory_space<vmem>>, %arg3: memref<16x1xf32, #tpu.memory_space<vmem>>, %arg4: memref<16x128xf32, #tpu.memory_space<vmem>>) attributes {dimension_semantics = [#tpu.dimension_semantics<parallel>], iteration_bounds = array<i64: 1>, scalar_prefetch = 0 : i64, scratch_operands = 0 : i64, tpu.core_type = #tpu.core_type<tc>, window_params = [{pipeline_mode = #tpu.pipeline_mode<synchronous>, transform_indices = @transform_0, window_bounds = array<i64: 16, 27>}, {transform_indices = @transform_1, window_bounds = array<i64: 27, 128>}, {pipeline_mode = #tpu.pipeline_mode<synchronous>, transform_indices = @transform_2, window_bounds = array<i64: 16, 1>}, {transform_indices = @transform_3, window_bounds = array<i64: 16, 128>}]} {
    %c0 = arith.constant 0 : index
    %c0_0 = arith.constant 0 : index
    %0 = vector.load %arg1[%c0, %c0_0] : memref<16x27xf32, #tpu.memory_space<vmem>>, vector<16x27xf32>
    %c0_1 = arith.constant 0 : index
    %c0_2 = arith.constant 0 : index
    %1 = vector.load %arg2[%c0_1, %c0_2] : memref<27x128xf32, #tpu.memory_space<vmem>>, vector<27x128xf32>
    %cst = arith.constant dense<0.000000e+00> : vector<16x128xf32>
    %2 = tpu.matmul %0, %1, %cst {dimension_numbers = #tpu.dot_dimension_numbers<[1], [0], [0], [1], [0, 0, 1, 1], [], []>} : vector<16x27xf32>, vector<27x128xf32>, vector<16x128xf32> -> vector<16x128xf32>
    %c0_3 = arith.constant 0 : index
    %c0_4 = arith.constant 0 : index
    %3 = vector.load %arg3[%c0_3, %c0_4] : memref<16x1xf32, #tpu.memory_space<vmem>>, vector<16x1xf32>
    %4 = vector.broadcast %3 : vector<16x1xf32> to vector<16x128xf32>
    %5 = arith.addf %2, %4 : vector<16x128xf32>
    %c0_5 = arith.constant 0 : index
    %c0_6 = arith.constant 0 : index
    %6 = vector.load %arg4[%c0_5, %c0_6] : memref<16x128xf32, #tpu.memory_space<vmem>>, vector<16x128xf32>
    tpu.vector_store %arg4[%c0_5, %c0_6], %5 {strides = array<i32>} : memref<16x128xf32, #tpu.memory_space<vmem>>, vector<16x128xf32>,
    return
  }
  func.func @transform_0(%arg0: i32) -> (i32, i32) {
    %c0_i32 = arith.constant 0 : i32
    %c0_i32_0 = arith.constant 0 : i32
    %c0_i32_1 = arith.constant 0 : i32
    return %c0_i32, %c0_i32_0 : i32, i32
  }
  func.func @transform_1(%arg0: i32) -> (i32, i32) {
    %c0_i32 = arith.constant 0 : i32
    %c0_i32_0 = arith.constant 0 : i32
    return %c0_i32, %arg0 : i32, i32
  }
  func.func @transform_2(%arg0: i32) -> (i32, i32) {
    %c0_i32 = arith.constant 0 : i32
    %c0_i32_0 = arith.constant 0 : i32
    %c0_i32_1 = arith.constant 0 : i32
    return %c0_i32, %c0_i32_0 : i32, i32
  }
  func.func @transform_3(%arg0: i32) -> (i32, i32) {
    %c0_i32 = arith.constant 0 : i32
    %c0_i32_0 = arith.constant 0 : i32
    return %c0_i32, %arg0 : i32, i32
  }
}

module attributes {stable_mosaic.version = 11 : i64} {
  func.func @_conv_gemm_kernel(%arg0: i32, %arg1: memref<16x72xf32, #tpu.memory_space<vmem>>, %arg2: memref<72x128xf32, #tpu.memory_space<vmem>>, %arg3: memref<16x1xf32, #tpu.memory_space<vmem>>, %arg4: memref<16x128xf32, #tpu.memory_space<vmem>>) attributes {dimension_semantics = [#tpu.dimension_semantics<parallel>], iteration_bounds = array<i64: 1>, scalar_prefetch = 0 : i64, scratch_operands = 0 : i64, tpu.core_type = #tpu.core_type<tc>, window_params = [{pipeline_mode = #tpu.pipeline_mode<synchronous>, transform_indices = @transform_0, window_bounds = array<i64: 16, 72>}, {transform_indices = @transform_1, window_bounds = array<i64: 72, 128>}, {pipeline_mode = #tpu.pipeline_mode<synchronous>, transform_indices = @transform_2, window_bounds = array<i64: 16, 1>}, {transform_indices = @transform_3, window_bounds = array<i64: 16, 128>}]} {
    %c0 = arith.constant 0 : index
    %c0_0 = arith.constant 0 : index
    %0 = vector.load %arg1[%c0, %c0_0] : memref<16x72xf32, #tpu.memory_space<vmem>>, vector<16x72xf32>
    %c0_1 = arith.constant 0 : index
    %c0_2 = arith.constant 0 : index
    %1 = vector.load %arg2[%c0_1, %c0_2] : memref<72x128xf32, #tpu.memory_space<vmem>>, vector<72x128xf32>
    %cst = arith.constant dense<0.000000e+00> : vector<16x128xf32>
    %2 = tpu.matmul %0, %1, %cst {dimension_numbers = #tpu.dot_dimension_numbers<[1], [0], [0], [1], [0, 0, 1, 1], [], []>} : vector<16x72xf32>, vector<72x128xf32>, vector<16x128xf32> -> vector<16x128xf32>
    %c0_3 = arith.constant 0 : index
    %c0_4 = arith.constant 0 : index
    %3 = vector.load %arg3[%c0_3, %c0_4] : memref<16x1xf32, #tpu.memory_space<vmem>>, vector<16x1xf32>
    %4 = vector.broadcast %3 : vector<16x1xf32> to vector<16x128xf32>
    %5 = arith.addf %2, %4 : vector<16x128xf32>
    %c0_5 = arith.constant 0 : index
    %c0_6 = arith.constant 0 : index
    %6 = vector.load %arg4[%c0_5, %c0_6] : memref<16x128xf32, #tpu.memory_space<vmem>>, vector<16x128xf32>
    tpu.vector_store %arg4[%c0_5, %c0_6], %5 {strides = array<i32>} : memref<16x128xf32, #tpu.memory_space<vmem>>, vector<16x128xf32>,
    return
  }
  func.func @transform_0(%arg0: i32) -> (i32, i32) {
    %c0_i32 = arith.constant 0 : i32
    %c0_i32_0 = arith.constant 0 : i32
    %c0_i32_1 = arith.constant 0 : i32
    return %c0_i32, %c0_i32_0 : i32, i32
  }
  func.func @transform_1(%arg0: i32) -> (i32, i32) {
    %c0_i32 = arith.constant 0 : i32
    %c0_i32_0 = arith.constant 0 : i32
    return %c0_i32, %arg0 : i32, i32
  }
  func.func @transform_2(%arg0: i32) -> (i32, i32) {
    %c0_i32 = arith.constant 0 : i32
    %c0_i32_0 = arith.constant 0 : i32
    %c0_i32_1 = arith.constant 0 : i32
    return %c0_i32, %c0_i32_0 : i32, i32
  }
  func.func @transform_3(%arg0: i32) -> (i32, i32) {
    %c0_i32 = arith.constant 0 : i32
    %c0_i32_0 = arith.constant 0 : i32
    return %c0_i32, %arg0 : i32, i32
  }
}

module attributes {stable_mosaic.version = 11 : i64} {
  func.func @_maxpool9_kernel(%arg0: i32, %arg1: memref<9x16x128xf32, #tpu.memory_space<vmem>>, %arg2: memref<16x128xf32, #tpu.memory_space<vmem>>) attributes {dimension_semantics = [#tpu.dimension_semantics<parallel>], iteration_bounds = array<i64: 1>, scalar_prefetch = 0 : i64, scratch_operands = 0 : i64, tpu.core_type = #tpu.core_type<tc>, window_params = [{transform_indices = @transform_0, window_bounds = array<i64: 9, 16, 128>}, {transform_indices = @transform_1, window_bounds = array<i64: 16, 128>}]} {
    %c0 = arith.constant 0 : index
    %c0_0 = arith.constant 0 : index
    %c0_1 = arith.constant 0 : index
    %0 = vector.load %arg1[%c0, %c0_0, %c0_1] : memref<9x16x128xf32, #tpu.memory_space<vmem>>, vector<1x16x128xf32>
    %1 = vector.shape_cast %0 : vector<1x16x128xf32> to vector<16x128xf32>
    %c1 = arith.constant 1 : index
    %c0_2 = arith.constant 0 : index
    %c0_3 = arith.constant 0 : index
    %2 = vector.load %arg1[%c1, %c0_2, %c0_3] : memref<9x16x128xf32, #tpu.memory_space<vmem>>, vector<1x16x128xf32>
    %3 = vector.shape_cast %2 : vector<1x16x128xf32> to vector<16x128xf32>
    %4 = arith.maximumf %1, %3 : vector<16x128xf32>
    %c2 = arith.constant 2 : index
    %c0_4 = arith.constant 0 : index
    %c0_5 = arith.constant 0 : index
    %5 = vector.load %arg1[%c2, %c0_4, %c0_5] : memref<9x16x128xf32, #tpu.memory_space<vmem>>, vector<1x16x128xf32>
    %6 = vector.shape_cast %5 : vector<1x16x128xf32> to vector<16x128xf32>
    %7 = arith.maximumf %4, %6 : vector<16x128xf32>
    %c3 = arith.constant 3 : index
    %c0_6 = arith.constant 0 : index
    %c0_7 = arith.constant 0 : index
    %8 = vector.load %arg1[%c3, %c0_6, %c0_7] : memref<9x16x128xf32, #tpu.memory_space<vmem>>, vector<1x16x128xf32>
    %9 = vector.shape_cast %8 : vector<1x16x128xf32> to vector<16x128xf32>
    %10 = arith.maximumf %7, %9 : vector<16x128xf32>
    %c4 = arith.constant 4 : index
    %c0_8 = arith.constant 0 : index
    %c0_9 = arith.constant 0 : index
    %11 = vector.load %arg1[%c4, %c0_8, %c0_9] : memref<9x16x128xf32, #tpu.memory_space<vmem>>, vector<1x16x128xf32>
    %12 = vector.shape_cast %11 : vector<1x16x128xf32> to vector<16x128xf32>
    %13 = arith.maximumf %10, %12 : vector<16x128xf32>
    %c5 = arith.constant 5 : index
    %c0_10 = arith.constant 0 : index
    %c0_11 = arith.constant 0 : index
    %14 = vector.load %arg1[%c5, %c0_10, %c0_11] : memref<9x16x128xf32, #tpu.memory_space<vmem>>, vector<1x16x128xf32>
    %15 = vector.shape_cast %14 : vector<1x16x128xf32> to vector<16x128xf32>
    %16 = arith.maximumf %13, %15 : vector<16x128xf32>
    %c6 = arith.constant 6 : index
    %c0_12 = arith.constant 0 : index
    %c0_13 = arith.constant 0 : index
    %17 = vector.load %arg1[%c6, %c0_12, %c0_13] : memref<9x16x128xf32, #tpu.memory_space<vmem>>, vector<1x16x128xf32>
    %18 = vector.shape_cast %17 : vector<1x16x128xf32> to vector<16x128xf32>
    %19 = arith.maximumf %16, %18 : vector<16x128xf32>
    %c7 = arith.constant 7 : index
    %c0_14 = arith.constant 0 : index
    %c0_15 = arith.constant 0 : index
    %20 = vector.load %arg1[%c7, %c0_14, %c0_15] : memref<9x16x128xf32, #tpu.memory_space<vmem>>, vector<1x16x128xf32>
    %21 = vector.shape_cast %20 : vector<1x16x128xf32> to vector<16x128xf32>
    %22 = arith.maximumf %19, %21 : vector<16x128xf32>
    %c8 = arith.constant 8 : index
    %c0_16 = arith.constant 0 : index
    %c0_17 = arith.constant 0 : index
    %23 = vector.load %arg1[%c8, %c0_16, %c0_17] : memref<9x16x128xf32, #tpu.memory_space<vmem>>, vector<1x16x128xf32>
    %24 = vector.shape_cast %23 : vector<1x16x128xf32> to vector<16x128xf32>
    %25 = arith.maximumf %22, %24 : vector<16x128xf32>
    %c0_18 = arith.constant 0 : index
    %c0_19 = arith.constant 0 : index
    %26 = vector.load %arg2[%c0_18, %c0_19] : memref<16x128xf32, #tpu.memory_space<vmem>>, vector<16x128xf32>
    tpu.vector_store %arg2[%c0_18, %c0_19], %25 {strides = array<i32>} : memref<16x128xf32, #tpu.memory_space<vmem>>, vector<16x128xf32>,
    return
  }
  func.func @transform_0(%arg0: i32) -> (i32, i32, i32) {
    %c0_i32 = arith.constant 0 : i32
    %c0_i32_0 = arith.constant 0 : i32
    %c0_i32_1 = arith.constant 0 : i32
    return %c0_i32, %c0_i32_0, %arg0 : i32, i32, i32
  }
  func.func @transform_1(%arg0: i32) -> (i32, i32) {
    %c0_i32 = arith.constant 0 : i32
    %c0_i32_0 = arith.constant 0 : i32
    return %c0_i32, %arg0 : i32, i32
  }
}

module attributes {stable_mosaic.version = 11 : i64} {
  func.func @_conv_gemm_kernel(%arg0: i32, %arg1: memref<16x288xf32, #tpu.memory_space<vmem>>, %arg2: memref<288x128xf32, #tpu.memory_space<vmem>>, %arg3: memref<16x1xf32, #tpu.memory_space<vmem>>, %arg4: memref<16x128xf32, #tpu.memory_space<vmem>>) attributes {dimension_semantics = [#tpu.dimension_semantics<parallel>], iteration_bounds = array<i64: 1>, scalar_prefetch = 0 : i64, scratch_operands = 0 : i64, tpu.core_type = #tpu.core_type<tc>, window_params = [{pipeline_mode = #tpu.pipeline_mode<synchronous>, transform_indices = @transform_0, window_bounds = array<i64: 16, 288>}, {transform_indices = @transform_1, window_bounds = array<i64: 288, 128>}, {pipeline_mode = #tpu.pipeline_mode<synchronous>, transform_indices = @transform_2, window_bounds = array<i64: 16, 1>}, {transform_indices = @transform_3, window_bounds = array<i64: 16, 128>}]} {
    %c0 = arith.constant 0 : index
    %c0_0 = arith.constant 0 : index
    %0 = vector.load %arg1[%c0, %c0_0] : memref<16x288xf32, #tpu.memory_space<vmem>>, vector<16x288xf32>
    %c0_1 = arith.constant 0 : index
    %c0_2 = arith.constant 0 : index
    %1 = vector.load %arg2[%c0_1, %c0_2] : memref<288x128xf32, #tpu.memory_space<vmem>>, vector<288x128xf32>
    %cst = arith.constant dense<0.000000e+00> : vector<16x128xf32>
    %2 = tpu.matmul %0, %1, %cst {dimension_numbers = #tpu.dot_dimension_numbers<[1], [0], [0], [1], [0, 0, 1, 1], [], []>} : vector<16x288xf32>, vector<288x128xf32>, vector<16x128xf32> -> vector<16x128xf32>
    %c0_3 = arith.constant 0 : index
    %c0_4 = arith.constant 0 : index
    %3 = vector.load %arg3[%c0_3, %c0_4] : memref<16x1xf32, #tpu.memory_space<vmem>>, vector<16x1xf32>
    %4 = vector.broadcast %3 : vector<16x1xf32> to vector<16x128xf32>
    %5 = arith.addf %2, %4 : vector<16x128xf32>
    %c0_5 = arith.constant 0 : index
    %c0_6 = arith.constant 0 : index
    %6 = vector.load %arg4[%c0_5, %c0_6] : memref<16x128xf32, #tpu.memory_space<vmem>>, vector<16x128xf32>
    tpu.vector_store %arg4[%c0_5, %c0_6], %5 {strides = array<i32>} : memref<16x128xf32, #tpu.memory_space<vmem>>, vector<16x128xf32>,
    return
  }
  func.func @transform_0(%arg0: i32) -> (i32, i32) {
    %c0_i32 = arith.constant 0 : i32
    %c0_i32_0 = arith.constant 0 : i32
    %c0_i32_1 = arith.constant 0 : i32
    return %c0_i32, %c0_i32_0 : i32, i32
  }
  func.func @transform_1(%arg0: i32) -> (i32, i32) {
    %c0_i32 = arith.constant 0 : i32
    %c0_i32_0 = arith.constant 0 : i32
    return %c0_i32, %arg0 : i32, i32
  }
  func.func @transform_2(%arg0: i32) -> (i32, i32) {
    %c0_i32 = arith.constant 0 : i32
    %c0_i32_0 = arith.constant 0 : i32
    %c0_i32_1 = arith.constant 0 : i32
    return %c0_i32, %c0_i32_0 : i32, i32
  }
  func.func @transform_3(%arg0: i32) -> (i32, i32) {
    %c0_i32 = arith.constant 0 : i32
    %c0_i32_0 = arith.constant 0 : i32
    return %c0_i32, %arg0 : i32, i32
  }
}

</mosaic_0001>

<llo_original>
// kernel: stem_block_forward.5
$region0: #{stem_block_forward.5}
  #allocation0 [shape = 'u32[]', space=smem, size = 0x4, offset = 0x4, fixed_abs, tag = 'smem constant byte address 0x4 - core index']
  #allocation1 [shape = 'u32[72,128]{1,0:T(1,128)}', space=vmem, size = 0x9000, scoped, tag = 'internal scratch']
  %s0 = inlined_call_operand.vmem [shape: f32[16,27], index: 0, kind: input, shape index: {}]
  %s1 = inlined_call_operand.vmem [shape: f32[27,128], index: 1, kind: input, shape index: {}]
  %s2 = inlined_call_operand.vmem [shape: f32[16,1], index: 2, kind: input, shape index: {}]
  %s3 = inlined_call_operand.vmem [shape: f32[16,128], index: 3, kind: output, shape index: {}]
  %s4 = sld [smem:[#allocation0]]
  $region22: #{stem_block_forward.5} parent=0
    _
  %s6 = ssub.s32 1, %s4
  %s7 = scalar_select 0, %s6, %s4
  // Predicated region
  $region2: #{stem_block_forward.5} parent=0 // pred_check
    _
  $region3: #{stem_block_forward.5} parent=0 // pred_check_branch
    %9 = sbr.rel (0) target = $region5
  $region4: #{stem_block_forward.5} parent=0 // pred_region
    _
  $region5: #{stem_block_forward.5} parent=0 // pred_fallthru
    _
  // Predicated region
  $region6: #{stem_block_forward.5} parent=0 // pred_check
    _
  $region7: #{stem_block_forward.5} parent=0 // pred_check_branch
    %11 = sbr.rel (0) target = $region9
  $region8: #{stem_block_forward.5} parent=0 // pred_region
    _
  $region9: #{stem_block_forward.5} parent=0 // pred_fallthru
    _
  // Predicated region
  $region10: #{stem_block_forward.5} parent=0 // pred_check
    _
  $region11: #{stem_block_forward.5} parent=0 // pred_check_branch
    %13 = sbr.rel (0) target = $region13
  $region12: #{stem_block_forward.5} parent=0 // pred_region
    _
  $region13: #{stem_block_forward.5} parent=0 // pred_fallthru
    _
  %v14 = vld [vmem:[%s0] sm:$0xff]
  %v15 = vld [vmem:[%s0 + $0x8] sm:$0xff]
  %v16 = vld [vmem:[%s1] sm:$0xff]
  %v17 = vld [vmem:[%s1 + $0x8] sm:$0xff]
  %v18 = vld [vmem:[%s1 + $0x10] sm:$0xff]
  %v19 = vld [vmem:[%s1 + $0x18] sm:$0x7]
  %v20 = vld [vmem:[%s2] sm:$0xff]
  %v21 = vld [vmem:[%s2 + $0x8] sm:$0xff]
  %23 = vset.pattern.permute.xlu0 0
  %24 = vperm.xlu0 %23, %v20
  %v25 = vpop.permute.xlu0 %24
  %28 = vset.pattern.permute.xlu0 0
  %29 = vperm.xlu0 %28, %v21
  %v30 = vpop.permute.xlu0 %29
  %vm32 = vcmask 220160
  %v34 = vsel %vm32, %v14, 0
  %v37 = vsel %vm32, %v15, 0
  %vm39 = vcmask 1042432
  %v41 = vsel %vm39, %v19, 0
  %43 = vmatpush.msra.mxu0 0.0
  %44 = vmatpush.msra.mxu0 0.0
  %45 = vmatpush.msra.mxu0 0.0
  %46 = vmatpush.msra.mxu0 0.0
  %47 = vmatpush.msra.mxu0 0.0
  %48 = vmatpush.msra.mxu0 0.0
  %49 = vmatpush.msra.mxu0 0.0
  %50 = vmatpush.msra.mxu0 0.0
  %51 = vmatpush.msra.mxu0 0.0
  %52 = vmatpush.msra.mxu0 0.0
  %53 = vmatpush.msra.mxu0 0.0
  %54 = vmatpush.msra.mxu0 0.0
  %55 = vmatpush.msra.mxu0 %v41
  %56 = vmatpush.msra.mxu0 %v18
  %57 = vmatpush.msra.mxu0 %v17
  %58 = vmatpush.msra.mxu0 %v16
  %59 = vmatmul.f32.gmra.mxu0 %v34
  %v60 = vpop.f32.mrf.mxu0
  %v61 = vadd.f32 %v25, %v60
  %62 = vmatmul.f32.gmra.mxu0 %v37
  %v63 = vpop.f32.mrf.mxu0
  %v64 = vadd.f32 %v30, %v63
  %65 = vdwg.mxu0
  %66 = vst [vmem:[%s3] sm:$0xff] %v61
  %67 = vst [vmem:[%s3 + $0x8] sm:$0xff] %v64
  // Predicated region
  $region14: #{stem_block_forward.5} parent=0 // pred_check
    _
  $region15: #{stem_block_forward.5} parent=0 // pred_check_branch
    %69 = sbr.rel (0) target = $region17
  $region16: #{stem_block_forward.5} parent=0 // pred_region
    _
  $region17: #{stem_block_forward.5} parent=0 // pred_fallthru
    _
  // Predicated region
  $region18: #{stem_block_forward.5} parent=0 // pred_check
    _
  $region19: #{stem_block_forward.5} parent=0 // pred_check_branch
    %71 = sbr.rel (0) target = $region21
  $region20: #{stem_block_forward.5} parent=0 // pred_region
    _
  $region21: #{stem_block_forward.5} parent=0 // pred_fallthru
    _

// kernel: stem_block_forward.6
$region0: #{stem_block_forward.6}
  #allocation0 [shape = 'u32[]', space=smem, size = 0x4, offset = 0x4, fixed_abs, tag = 'smem constant byte address 0x4 - core index']
  #allocation1 [shape = 'u32[72,128]{1,0:T(1,128)}', space=vmem, size = 0x9000, scoped, tag = 'internal scratch']
  %s0 = inlined_call_operand.vmem [shape: f32[8,16], index: 0, kind: input, shape index: {}]
  %s1 = inlined_call_operand.vmem [shape: f32[16,128], index: 1, kind: input, shape index: {}]
  %s2 = inlined_call_operand.vmem [shape: f32[8,1], index: 2, kind: input, shape index: {}]
  %s3 = inlined_call_operand.vmem [shape: f32[8,128], index: 3, kind: output, shape index: {}]
  %s4 = sld [smem:[#allocation0]]
  $region22: #{stem_block_forward.6} parent=0
    _
  %s6 = ssub.s32 1, %s4
  %s7 = scalar_select 0, %s6, %s4
  // Predicated region
  $region2: #{stem_block_forward.6} parent=0 // pred_check
    _
  $region3: #{stem_block_forward.6} parent=0 // pred_check_branch
    %9 = sbr.rel (0) target = $region5
  $region4: #{stem_block_forward.6} parent=0 // pred_region
    _
  $region5: #{stem_block_forward.6} parent=0 // pred_fallthru
    _
  // Predicated region
  $region6: #{stem_block_forward.6} parent=0 // pred_check
    _
  $region7: #{stem_block_forward.6} parent=0 // pred_check_branch
    %11 = sbr.rel (0) target = $region9
  $region8: #{stem_block_forward.6} parent=0 // pred_region
    _
  $region9: #{stem_block_forward.6} parent=0 // pred_fallthru
    _
  // Predicated region
  $region10: #{stem_block_forward.6} parent=0 // pred_check
    _
  $region11: #{stem_block_forward.6} parent=0 // pred_check_branch
    %13 = sbr.rel (0) target = $region13
  $region12: #{stem_block_forward.6} parent=0 // pred_region
    _
  $region13: #{stem_block_forward.6} parent=0 // pred_fallthru
    _
  %v14 = vld [vmem:[%s0] sm:$0xff]
  %v15 = vld [vmem:[%s1] sm:$0xff]
  %v16 = vld [vmem:[%s1 + $0x8] sm:$0xff]
  %v17 = vld [vmem:[%s2] sm:$0xff]
  %19 = vset.pattern.permute.xlu0 0
  %20 = vperm.xlu0 %19, %v17
  %v21 = vpop.permute.xlu0 %20
  %vm23 = vcmask 130048
  %v25 = vsel %vm23, %v14, 0
  %27 = vmatpush.msra.mxu0 0.0
  %28 = vmatpush.msra.mxu0 0.0
  %29 = vmatpush.msra.mxu0 0.0
  %30 = vmatpush.msra.mxu0 0.0
  %31 = vmatpush.msra.mxu0 0.0
  %32 = vmatpush.msra.mxu0 0.0
  %33 = vmatpush.msra.mxu0 0.0
  %34 = vmatpush.msra.mxu0 0.0
  %35 = vmatpush.msra.mxu0 0.0
  %36 = vmatpush.msra.mxu0 0.0
  %37 = vmatpush.msra.mxu0 0.0
  %38 = vmatpush.msra.mxu0 0.0
  %39 = vmatpush.msra.mxu0 0.0
  %40 = vmatpush.msra.mxu0 0.0
  %41 = vmatpush.msra.mxu0 %v16
  %42 = vmatpush.msra.mxu0 %v15
  %43 = vmatmul.f32.gmra.mxu0 %v25
  %v44 = vpop.f32.mrf.mxu0
  %v45 = vadd.f32 %v21, %v44
  %46 = vdwg.mxu0
  %47 = vst [vmem:[%s3] sm:$0xff] %v45
  // Predicated region
  $region14: #{stem_block_forward.6} parent=0 // pred_check
    _
  $region15: #{stem_block_forward.6} parent=0 // pred_check_branch
    %49 = sbr.rel (0) target = $region17
  $region16: #{stem_block_forward.6} parent=0 // pred_region
    _
  $region17: #{stem_block_forward.6} parent=0 // pred_fallthru
    _
  // Predicated region
  $region18: #{stem_block_forward.6} parent=0 // pred_check
    _
  $region19: #{stem_block_forward.6} parent=0 // pred_check_branch
    %51 = sbr.rel (0) target = $region21
  $region20: #{stem_block_forward.6} parent=0 // pred_region
    _
  $region21: #{stem_block_forward.6} parent=0 // pred_fallthru
    _

// kernel: stem_block_forward.7
$region0: #{stem_block_forward.7}
  #allocation0 [shape = 'u32[]', space=smem, size = 0x4, offset = 0x4, fixed_abs, tag = 'smem constant byte address 0x4 - core index']
  #allocation1 [shape = 'u32[72,128]{1,0:T(1,128)}', space=vmem, size = 0x9000, scoped, tag = 'internal scratch']
  %s0 = inlined_call_operand.vmem [shape: f32[16,72], index: 0, kind: input, shape index: {}]
  %s1 = inlined_call_operand.vmem [shape: f32[72,128], index: 1, kind: input, shape index: {}]
  %s2 = inlined_call_operand.vmem [shape: f32[16,1], index: 2, kind: input, shape index: {}]
  %s3 = inlined_call_operand.vmem [shape: f32[16,128], index: 3, kind: output, shape index: {}]
  %s4 = sld [smem:[#allocation0]]
  $region22: #{stem_block_forward.7} parent=0
    _
  %s6 = ssub.s32 1, %s4
  %s7 = scalar_select 0, %s6, %s4
  // Predicated region
  $region2: #{stem_block_forward.7} parent=0 // pred_check
    _
  $region3: #{stem_block_forward.7} parent=0 // pred_check_branch
    %9 = sbr.rel (0) target = $region5
  $region4: #{stem_block_forward.7} parent=0 // pred_region
    _
  $region5: #{stem_block_forward.7} parent=0 // pred_fallthru
    _
  // Predicated region
  $region6: #{stem_block_forward.7} parent=0 // pred_check
    _
  $region7: #{stem_block_forward.7} parent=0 // pred_check_branch
    %11 = sbr.rel (0) target = $region9
  $region8: #{stem_block_forward.7} parent=0 // pred_region
    _
  $region9: #{stem_block_forward.7} parent=0 // pred_fallthru
    _
  // Predicated region
  $region10: #{stem_block_forward.7} parent=0 // pred_check
    _
  $region11: #{stem_block_forward.7} parent=0 // pred_check_branch
    %13 = sbr.rel (0) target = $region13
  $region12: #{stem_block_forward.7} parent=0 // pred_region
    _
  $region13: #{stem_block_forward.7} parent=0 // pred_fallthru
    _
  %v14 = vld [vmem:[%s0] sm:$0xff]
  %v15 = vld [vmem:[%s0 + $0x8] sm:$0xff]
  %v16 = vld [vmem:[%s1] sm:$0xff]
  %v17 = vld [vmem:[%s1 + $0x8] sm:$0xff]
  %v18 = vld [vmem:[%s1 + $0x10] sm:$0xff]
  %v19 = vld [vmem:[%s1 + $0x18] sm:$0xff]
  %v20 = vld [vmem:[%s1 + $0x20] sm:$0xff]
  %v21 = vld [vmem:[%s1 + $0x28] sm:$0xff]
  %v22 = vld [vmem:[%s1 + $0x30] sm:$0xff]
  %v23 = vld [vmem:[%s1 + $0x38] sm:$0xff]
  %v24 = vld [vmem:[%s1 + $0x40] sm:$0xff]
  %v25 = vld [vmem:[%s2] sm:$0xff]
  %v26 = vld [vmem:[%s2 + $0x8] sm:$0xff]
  %28 = vset.pattern.permute.xlu0 0
  %29 = vperm.xlu0 %28, %v25
  %v30 = vpop.permute.xlu0 %29
  %33 = vset.pattern.permute.xlu0 0
  %34 = vperm.xlu0 %33, %v26
  %v35 = vpop.permute.xlu0 %34
  %vm37 = vcmask 588800
  %v39 = vsel %vm37, %v14, 0
  %v42 = vsel %vm37, %v15, 0
  %44 = vmatpush.msra.mxu0 0.0
  %45 = vmatpush.msra.mxu0 0.0
  %46 = vmatpush.msra.mxu0 0.0
  %47 = vmatpush.msra.mxu0 0.0
  %48 = vmatpush.msra.mxu0 0.0
  %49 = vmatpush.msra.mxu0 0.0
  %50 = vmatpush.msra.mxu0 0.0
  %51 = vmatpush.msra.mxu0 %v24
  %52 = vmatpush.msra.mxu0 %v23
  %53 = vmatpush.msra.mxu0 %v22
  %54 = vmatpush.msra.mxu0 %v21
  %55 = vmatpush.msra.mxu0 %v20
  %56 = vmatpush.msra.mxu0 %v19
  %57 = vmatpush.msra.mxu0 %v18
  %58 = vmatpush.msra.mxu0 %v17
  %59 = vmatpush.msra.mxu0 %v16
  %60 = vmatmul.f32.gmra.mxu0 %v39
  %v61 = vpop.f32.mrf.mxu0
  %v62 = vadd.f32 %v30, %v61
  %63 = vmatmul.f32.gmra.mxu0 %v42
  %v64 = vpop.f32.mrf.mxu0
  %v65 = vadd.f32 %v35, %v64
  %66 = vdwg.mxu0
  %67 = vst [vmem:[%s3] sm:$0xff] %v62
  %68 = vst [vmem:[%s3 + $0x8] sm:$0xff] %v65
  // Predicated region
  $region14: #{stem_block_forward.7} parent=0 // pred_check
    _
  $region15: #{stem_block_forward.7} parent=0 // pred_check_branch
    %70 = sbr.rel (0) target = $region17
  $region16: #{stem_block_forward.7} parent=0 // pred_region
    _
  $region17: #{stem_block_forward.7} parent=0 // pred_fallthru
    _
  // Predicated region
  $region18: #{stem_block_forward.7} parent=0 // pred_check
    _
  $region19: #{stem_block_forward.7} parent=0 // pred_check_branch
    %72 = sbr.rel (0) target = $region21
  $region20: #{stem_block_forward.7} parent=0 // pred_region
    _
  $region21: #{stem_block_forward.7} parent=0 // pred_fallthru
    _

// kernel: stem_block_forward.8
$region0: #{stem_block_forward.8}
  #allocation0 [shape = 'u32[]', space=smem, size = 0x4, offset = 0x4, fixed_abs, tag = 'smem constant byte address 0x4 - core index']
  #allocation1 [shape = 'u32[72,128]{1,0:T(1,128)}', space=vmem, size = 0x9000, scoped, tag = 'internal scratch']
  %s0 = inlined_call_operand.vmem [shape: f32[9,16,128], index: 0, kind: input, shape index: {}]
  %s1 = inlined_call_operand.vmem [shape: f32[16,128], index: 1, kind: output, shape index: {}]
  %s2 = sld [smem:[#allocation0]]
  $region14: #{stem_block_forward.8} parent=0
    _
  %s4 = ssub.s32 1, %s2
  %s5 = scalar_select 0, %s4, %s2
  // Predicated region
  $region2: #{stem_block_forward.8} parent=0 // pred_check
    _
  $region3: #{stem_block_forward.8} parent=0 // pred_check_branch
    %7 = sbr.rel (0) target = $region5
  $region4: #{stem_block_forward.8} parent=0 // pred_region
    _
  $region5: #{stem_block_forward.8} parent=0 // pred_fallthru
    _
  %v8 = vld [vmem:[%s0] sm:$0xff]
  %v9 = vld [vmem:[%s0 + $0x8] sm:$0xff]
  %s10 = scalar_lea.vmem %s0, 16
  %v11 = vld [vmem:[%s10] sm:$0xff]
  %v12 = vld [vmem:[%s10 + $0x8] sm:$0xff]
  %v13 = vmax.f32 %v8, %v11
  %v14 = vmax.f32 %v9, %v12
  %s15 = scalar_lea.vmem %s0, 32
  %v16 = vld [vmem:[%s15] sm:$0xff]
  %v17 = vld [vmem:[%s15 + $0x8] sm:$0xff]
  %v18 = vmax.f32 %v13, %v16
  %v19 = vmax.f32 %v14, %v17
  %s20 = scalar_lea.vmem %s0, 48
  %v21 = vld [vmem:[%s20] sm:$0xff]
  %v22 = vld [vmem:[%s20 + $0x8] sm:$0xff]
  %v23 = vmax.f32 %v18, %v21
  %v24 = vmax.f32 %v19, %v22
  %s25 = scalar_lea.vmem %s0, 64
  %v26 = vld [vmem:[%s25] sm:$0xff]
  %v27 = vld [vmem:[%s25 + $0x8] sm:$0xff]
  %v28 = vmax.f32 %v23, %v26
  %v29 = vmax.f32 %v24, %v27
  %s30 = scalar_lea.vmem %s0, 80
  %v31 = vld [vmem:[%s30] sm:$0xff]
  %v32 = vld [vmem:[%s30 + $0x8] sm:$0xff]
  %v33 = vmax.f32 %v28, %v31
  %v34 = vmax.f32 %v29, %v32
  %s35 = scalar_lea.vmem %s0, 96
  %v36 = vld [vmem:[%s35] sm:$0xff]
  %v37 = vld [vmem:[%s35 + $0x8] sm:$0xff]
  %v38 = vmax.f32 %v33, %v36
  %v39 = vmax.f32 %v34, %v37
  %s40 = scalar_lea.vmem %s0, 112
  %v41 = vld [vmem:[%s40] sm:$0xff]
  %v42 = vld [vmem:[%s40 + $0x8] sm:$0xff]
  %v43 = vmax.f32 %v38, %v41
  %v44 = vmax.f32 %v39, %v42
  %s45 = scalar_lea.vmem %s0, 128
  %v46 = vld [vmem:[%s45] sm:$0xff]
  %v47 = vld [vmem:[%s45 + $0x8] sm:$0xff]
  %v48 = vmax.f32 %v43, %v46
  %v49 = vmax.f32 %v44, %v47
  %50 = vst [vmem:[%s1] sm:$0xff] %v48
  %51 = vst [vmem:[%s1 + $0x8] sm:$0xff] %v49
  // Predicated region
  $region6: #{stem_block_forward.8} parent=0 // pred_check
    _
  $region7: #{stem_block_forward.8} parent=0 // pred_check_branch
    %53 = sbr.rel (0) target = $region9
  $region8: #{stem_block_forward.8} parent=0 // pred_region
    _
  $region9: #{stem_block_forward.8} parent=0 // pred_fallthru
    _
  // Predicated region
  $region10: #{stem_block_forward.8} parent=0 // pred_check
    _
  $region11: #{stem_block_forward.8} parent=0 // pred_check_branch
    %55 = sbr.rel (0) target = $region13
  $region12: #{stem_block_forward.8} parent=0 // pred_region
    _
  $region13: #{stem_block_forward.8} parent=0 // pred_fallthru
    _

// kernel: stem_block_forward.9
$region0: #{stem_block_forward.9}
  #allocation0 [shape = 'u32[]', space=smem, size = 0x4, offset = 0x4, fixed_abs, tag = 'smem constant byte address 0x4 - core index']
  #allocation1 [shape = 'u32[72,128]{1,0:T(1,128)}', space=vmem, size = 0x9000, scoped, tag = 'internal scratch']
  %s0 = inlined_call_operand.vmem [shape: f32[16,288], index: 0, kind: input, shape index: {}]
  %s1 = inlined_call_operand.vmem [shape: f32[288,128], index: 1, kind: input, shape index: {}]
  %s2 = inlined_call_operand.vmem [shape: f32[16,1], index: 2, kind: input, shape index: {}]
  %s3 = inlined_call_operand.vmem [shape: f32[16,128], index: 3, kind: output, shape index: {}]
  %s4 = sld [smem:[#allocation0]]
  $region22: #{stem_block_forward.9} parent=0
    _
  %s6 = ssub.s32 1, %s4
  %s7 = scalar_select 0, %s6, %s4
  // Predicated region
  $region2: #{stem_block_forward.9} parent=0 // pred_check
    _
  $region3: #{stem_block_forward.9} parent=0 // pred_check_branch
    %9 = sbr.rel (0) target = $region5
  $region4: #{stem_block_forward.9} parent=0 // pred_region
    _
  $region5: #{stem_block_forward.9} parent=0 // pred_fallthru
    _
  // Predicated region
  $region6: #{stem_block_forward.9} parent=0 // pred_check
    _
  $region7: #{stem_block_forward.9} parent=0 // pred_check_branch
    %11 = sbr.rel (0) target = $region9
  $region8: #{stem_block_forward.9} parent=0 // pred_region
    _
  $region9: #{stem_block_forward.9} parent=0 // pred_fallthru
    _
  // Predicated region
  $region10: #{stem_block_forward.9} parent=0 // pred_check
    _
  $region11: #{stem_block_forward.9} parent=0 // pred_check_branch
    %13 = sbr.rel (0) target = $region13
  $region12: #{stem_block_forward.9} parent=0 // pred_region
    _
  $region13: #{stem_block_forward.9} parent=0 // pred_fallthru
    _
  %v14 = vld [vmem:[%s0] sm:$0xff]
  %v15 = vld [vmem:[%s0 + $0x8] sm:$0xff]
  %v16 = vld [vmem:[%s0 + $0x10] sm:$0xff]
  %v17 = vld [vmem:[%s0 + $0x18] sm:$0xff]
  %v18 = vld [vmem:[%s0 + $0x20] sm:$0xff]
  %v19 = vld [vmem:[%s0 + $0x28] sm:$0xff]
  %v20 = vld [vmem:[%s1] sm:$0xff]
  %v21 = vld [vmem:[%s1 + $0x8] sm:$0xff]
  %v22 = vld [vmem:[%s1 + $0x10] sm:$0xff]
  %v23 = vld [vmem:[%s1 + $0x18] sm:$0xff]
  %v24 = vld [vmem:[%s1 + $0x20] sm:$0xff]
  %v25 = vld [vmem:[%s1 + $0x28] sm:$0xff]
  %v26 = vld [vmem:[%s1 + $0x30] sm:$0xff]
  %v27 = vld [vmem:[%s1 + $0x38] sm:$0xff]
  %v28 = vld [vmem:[%s1 + $0x40] sm:$0xff]
  %v29 = vld [vmem:[%s1 + $0x48] sm:$0xff]
  %v30 = vld [vmem:[%s1 + $0x50] sm:$0xff]
  %v31 = vld [vmem:[%s1 + $0x58] sm:$0xff]
  %v32 = vld [vmem:[%s1 + $0x60] sm:$0xff]
  %v33 = vld [vmem:[%s1 + $0x68] sm:$0xff]
  %v34 = vld [vmem:[%s1 + $0x70] sm:$0xff]
  %v35 = vld [vmem:[%s1 + $0x78] sm:$0xff]
  %v36 = vld [vmem:[%s1 + $0x80] sm:$0xff]
  %v37 = vld [vmem:[%s1 + $0x88] sm:$0xff]
  %v38 = vld [vmem:[%s1 + $0x90] sm:$0xff]
  %v39 = vld [vmem:[%s1 + $0x98] sm:$0xff]
  %v40 = vld [vmem:[%s1 + $0xa0] sm:$0xff]
  %v41 = vld [vmem:[%s1 + $0xa8] sm:$0xff]
  %v42 = vld [vmem:[%s1 + $0xb0] sm:$0xff]
  %v43 = vld [vmem:[%s1 + $0xb8] sm:$0xff]
  %v44 = vld [vmem:[%s1 + $0xc0] sm:$0xff]
  %v45 = vld [vmem:[%s1 + $0xc8] sm:$0xff]
  %v46 = vld [vmem:[%s1 + $0xd0] sm:$0xff]
  %v47 = vld [vmem:[%s1 + $0xd8] sm:$0xff]
  %v48 = vld [vmem:[%s1 + $0xe0] sm:$0xff]
  %v49 = vld [vmem:[%s1 + $0xe8] sm:$0xff]
  %v50 = vld [vmem:[%s1 + $0xf0] sm:$0xff]
  %v51 = vld [vmem:[%s1 + $0xf8] sm:$0xff]
  %v52 = vld [vmem:[%s1 + $0x100] sm:$0xff]
  %v53 = vld [vmem:[%s1 + $0x108] sm:$0xff]
  %v54 = vld [vmem:[%s1 + $0x110] sm:$0xff]
  %v55 = vld [vmem:[%s1 + $0x118] sm:$0xff]
  %v56 = vld [vmem:[%s2] sm:$0xff]
  %v57 = vld [vmem:[%s2 + $0x8] sm:$0xff]
  %59 = vset.pattern.permute.xlu0 0
  %60 = vperm.xlu0 %59, %v56
  %v61 = vpop.permute.xlu0 %60
  %64 = vset.pattern.permute.xlu0 0
  %65 = vperm.xlu0 %64, %v57
  %v66 = vpop.permute.xlu0 %65
  %vm68 = vcmask 261120
  %v70 = vsel %vm68, %v16, 0
  %v73 = vsel %vm68, %v19, 0
  %75 = vmatpush.msra.mxu0 %v35
  %76 = vmatpush.msra.mxu0 %v34
  %77 = vmatpush.msra.mxu0 %v33
  %78 = vmatpush.msra.mxu0 %v32
  %79 = vmatpush.msra.mxu0 %v31
  %80 = vmatpush.msra.mxu0 %v30
  %81 = vmatpush.msra.mxu0 %v29
  %82 = vmatpush.msra.mxu0 %v28
  %83 = vmatpush.msra.mxu0 %v27
  %84 = vmatpush.msra.mxu0 %v26
  %85 = vmatpush.msra.mxu0 %v25
  %86 = vmatpush.msra.mxu0 %v24
  %87 = vmatpush.msra.mxu0 %v23
  %88 = vmatpush.msra.mxu0 %v22
  %89 = vmatpush.msra.mxu0 %v21
  %90 = vmatpush.msra.mxu0 %v20
  %91 = vmatmul.f32.gmra.mxu0 %v14
  %v92 = vpop.f32.mrf.mxu0
  %v93 = vadd.f32 %v61, %v92
  %94 = vmatmul.f32.gmra.mxu0 %v17
  %v95 = vpop.f32.mrf.mxu0
  %v96 = vadd.f32 %v66, %v95
  %97 = vdwg.mxu0
  %98 = vmatpush.msra.mxu0 %v51
  %99 = vmatpush.msra.mxu0 %v50
  %100 = vmatpush.msra.mxu0 %v49
  %101 = vmatpush.msra.mxu0 %v48
  %102 = vmatpush.msra.mxu0 %v47
  %103 = vmatpush.msra.mxu0 %v46
  %104 = vmatpush.msra.mxu0 %v45
  %105 = vmatpush.msra.mxu0 %v44
  %106 = vmatpush.msra.mxu0 %v43
  %107 = vmatpush.msra.mxu0 %v42
  %108 = vmatpush.msra.mxu0 %v41
  %109 = vmatpush.msra.mxu0 %v40
  %110 = vmatpush.msra.mxu0 %v39
  %111 = vmatpush.msra.mxu0 %v38
  %112 = vmatpush.msra.mxu0 %v37
  %113 = vmatpush.msra.mxu0 %v36
  %114 = vmatmul.f32.gmra.mxu0 %v15
  %v115 = vpop.f32.mrf.mxu0
  %v116 = vadd.f32 %v93, %v115
  %117 = vmatmul.f32.gmra.mxu0 %v18
  %v118 = vpop.f32.mrf.mxu0
  %v119 = vadd.f32 %v96, %v118
  %120 = vdwg.mxu0
  %121 = vmatpush.msra.mxu0 0.0
  %122 = vmatpush.msra.mxu0 0.0
  %123 = vmatpush.msra.mxu0 0.0
  %124 = vmatpush.msra.mxu0 0.0
  %125 = vmatpush.msra.mxu0 0.0
  %126 = vmatpush.msra.mxu0 0.0
  %127 = vmatpush.msra.mxu0 0.0
  %128 = vmatpush.msra.mxu0 0.0
  %129 = vmatpush.msra.mxu0 0.0
  %130 = vmatpush.msra.mxu0 0.0
  %131 = vmatpush.msra.mxu0 0.0
  %132 = vmatpush.msra.mxu0 0.0
  %133 = vmatpush.msra.mxu0 %v55
  %134 = vmatpush.msra.mxu0 %v54
  %135 = vmatpush.msra.mxu0 %v53
  %136 = vmatpush.msra.mxu0 %v52
  %137 = vmatmul.f32.gmra.mxu0 %v70
  %v138 = vpop.f32.mrf.mxu0
  %v139 = vadd.f32 %v116, %v138
  %140 = vmatmul.f32.gmra.mxu0 %v73
  %v141 = vpop.f32.mrf.mxu0
  %v142 = vadd.f32 %v119, %v141
  %143 = vdwg.mxu0
  %144 = vst [vmem:[%s3] sm:$0xff] %v139
  %145 = vst [vmem:[%s3 + $0x8] sm:$0xff] %v142
  // Predicated region
  $region14: #{stem_block_forward.9} parent=0 // pred_check
    _
  $region15: #{stem_block_forward.9} parent=0 // pred_check_branch
    %147 = sbr.rel (0) target = $region17
  $region16: #{stem_block_forward.9} parent=0 // pred_region
    _
  $region17: #{stem_block_forward.9} parent=0 // pred_fallthru
    _
  // Predicated region
  $region18: #{stem_block_forward.9} parent=0 // pred_check
    _
  $region19: #{stem_block_forward.9} parent=0 // pred_check_branch
    %149 = sbr.rel (0) target = $region21
  $region20: #{stem_block_forward.9} parent=0 // pred_region
    _
  $region21: #{stem_block_forward.9} parent=0 // pred_fallthru
    _

</llo_original>
